<compile_context>
chip_gen: v6e
topology: v6e:2x2x1
jax: 0.10.0
libtpu: 0.0.40
codegen_flags: <defaults>
</compile_context>

<pallas_src>
import jax
import jax.numpy as jnp
from jax.experimental import pallas as pl
from jax.experimental.pallas import tpu as pltpu


def _round_up(x, m):
    return ((x + m - 1) // m) * m


def _pick_batch_tile(B, *, max_tb=1024, min_steps=2):
    """Pick (TB, B_pad) for the 1-D batch grid.

    * TB multiple of 16 (8 for tiny batches) for clean sublane tiling,
    * at least `min_steps` grid steps when the batch allows it (so the
      "parallel" batch axis can shard across v7x's two TensorCores),
    * padding waste kept <= 12.5%,
    * TB capped at `max_tb` (per-step overhead amortization vs. VMEM).
    """
    B_align = _round_up(B, 8) if B < 16 else _round_up(B, 16)
    if B_align <= 16:
        return B_align, B_align          # tiny batch: single step, minimal pad
    upper = min(max_tb, _round_up(-(-B_align // min_steps), 16))
    tb = max(16, upper)
    while tb > 16:
        b_pad = _round_up(B_align, tb)
        if (b_pad - B_align) * 8 <= b_pad:   # <= 12.5% padded rows
            break
        tb -= 16
    return tb, _round_up(B_align, tb)


def prepare_params(w1, b1, w2, b2):
    """One-time (model-load) parameter prep.  NOT part of the per-call path.

    w1: (D, H) fc1 weight (already (in, out))   -> bf16
    b1: (1, H) fc1 bias                          -> f32
    w2: (H, C) fc2 weight (already (in, out))   -> f32, class dim padded to 128
        lanes so the in-kernel fc2 dot is a standard lane-dense MXU shape
        (only the store picks out the real C lanes).
    b2: (1, C) fc2 bias                          -> f32 (unpadded)
    """
    H, C = w2.shape
    C_lane = _round_up(C, 128)
    w1_b = w1.astype(jnp.bfloat16)
    b1_f = b1.reshape(1, -1).astype(jnp.float32)
    w2_f = jnp.pad(w2.astype(jnp.float32), ((0, 0), (0, C_lane - C)))
    b2_f = b2.reshape(1, -1).astype(jnp.float32)
    return w1_b, b1_f, w2_f, b2_f


def sentiment_ann_kernel(x_ref, w1_ref, b1_ref, w2_ref, b2_ref, o_ref):
    # fc1: cast the f32 x tile to bf16 in VMEM (no wrapper-side cast pass),
    # bf16 x bf16 MXU dot with f32 accumulation.
    h = jnp.dot(x_ref[...].astype(jnp.bfloat16), w1_ref[...],
                preferred_element_type=jnp.float32)
    # bias + ReLU on the f32 accumulator.
    h = jnp.maximum(h + b1_ref[...], 0.0)
    # dropout (eval/inference mode) == identity
    # fc2 in f32: (TB, H) @ (H, 128) lane-dense dot (w2 is VMEM-resident);
    # only the first C lanes are real logits.
    logits = jnp.dot(h, w2_ref[...], preferred_element_type=jnp.float32)
    c = o_ref.shape[-1]
    # Store exactly C logit columns: tiny masked vst, 8 B/row HBM write.
    o_ref[...] = logits[:, :c] + b2_ref[...]


def sentiment_ann_forward(x, w1_b, b1_f, w2_f, b2_f, *, block_batch=1024,
                          min_steps=2):
    """Fused SentimentANN forward.  Parameters must come from prepare_params().

    x    : (B, D) f32 activations
    w1_b : (D, H)      bf16 fc1 weight
    b1_f : (1, H)      f32  fc1 bias
    w2_f : (H, C_lane) f32  fc2 weight, class dim padded to 128 lanes
    b2_f : (1, C)      f32  fc2 bias (unpadded)
    """
    B, D = x.shape
    H = w1_b.shape[1]
    C = b2_f.shape[1]
    C_lane = w2_f.shape[1]

    TB, B_pad = _pick_batch_tile(B, max_tb=block_batch, min_steps=min_steps)
    x_in = x if B_pad == B else jnp.pad(x, ((0, B_pad - B), (0, 0)))

    grid = (B_pad // TB,)
    flops = 2 * B_pad * D * H + 2 * B_pad * H * C_lane
    bytes_accessed = (B_pad * D * 4                      # x read (f32)
                      + w1_b.size * 2 + b1_f.size * 4    # resident params
                      + w2_f.size * 4 + b2_f.size * 4
                      + B_pad * C * 4)                   # exact logits write

    out = pl.pallas_call(
        sentiment_ann_kernel,
        out_shape=jax.ShapeDtypeStruct((B_pad, C), jnp.float32),
        grid=grid,
        in_specs=[
            pl.BlockSpec((TB, D), lambda i: (i, 0)),        # x: tiled over batch
            pl.BlockSpec((D, H), lambda i: (0, 0)),          # w1: VMEM-resident
            pl.BlockSpec((1, H), lambda i: (0, 0)),           # b1: VMEM-resident
            pl.BlockSpec((H, C_lane), lambda i: (0, 0)),      # w2: VMEM-resident
            pl.BlockSpec((1, C), lambda i: (0, 0)),           # b2: VMEM-resident
        ],
        out_specs=pl.BlockSpec((TB, C), lambda i: (i, 0)),    # exact-width logits
        compiler_params=pltpu.CompilerParams(
            dimension_semantics=("parallel",)),
        cost_estimate=pl.CostEstimate(
            flops=flops, transcendentals=0, bytes_accessed=bytes_accessed),
    )(x_in, w1_b, b1_f, w2_f, b2_f)

    if B_pad != B:
        out = out[:B]
    if out.dtype != x.dtype:
        out = out.astype(x.dtype)
    return out


if __name__ == "__main__":
    # Shapes consistent with the module's forward: batch=8, input_dim=64,
    # hidden_dim=128 (module default), num_classes=2.
    batch, input_dim, hidden_dim, num_classes = 8, 64, 128, 2

    key = jax.random.PRNGKey(0)
    kx, kw1, kb1, kw2, kb2 = jax.random.split(key, 5)

    x = jax.random.normal(kx, (batch, input_dim), dtype=jnp.float32)

    # PyTorch Linear stores (out, in); we keep the transposed (in, out) layout.
    w1 = jax.random.normal(kw1, (input_dim, hidden_dim), dtype=jnp.float32) * 0.05
    b1 = jax.random.normal(kb1, (1, hidden_dim), dtype=jnp.float32) * 0.01
    w2 = jax.random.normal(kw2, (hidden_dim, num_classes), dtype=jnp.float32) * 0.05
    b2 = jax.random.normal(kb2, (1, num_classes), dtype=jnp.float32) * 0.01

    # One-time parameter prep (model-load time), then jit'd forward.
    params = prepare_params(w1, b1, w2, b2)
    fwd = jax.jit(sentiment_ann_forward)

    out = jax.block_until_ready(fwd(x, *params))
    ref = jnp.maximum(x @ w1 + b1, 0.0) @ w2 + b2
    assert out.shape == (batch, num_classes)
    assert jnp.allclose(out, ref, atol=2e-2, rtol=2e-2), (
        jnp.max(jnp.abs(out - ref)))

    # Also exercise a non-divisible, multi-step batch (padding + 2 grid steps).
    x2 = jax.random.normal(kx, (100, input_dim), dtype=jnp.float32)
    out2 = jax.block_until_ready(fwd(x2, *params))
    ref2 = jnp.maximum(x2 @ w1 + b1, 0.0) @ w2 + b2
    assert out2.shape == (100, num_classes)
    assert jnp.allclose(out2, ref2, atol=2e-2, rtol=2e-2), (
        jnp.max(jnp.abs(out2 - ref2)))

    print("KERNEL_OK")
</pallas_src>

<mosaic_0001>
module attributes {stable_mosaic.version = 11 : i64} {
  func.func @sentiment_ann_kernel(%arg0: i32, %arg1: memref<8x64xf32, #tpu.memory_space<vmem>>, %arg2: memref<64x128xbf16, #tpu.memory_space<vmem>>, %arg3: memref<1x128xf32, #tpu.memory_space<vmem>>, %arg4: memref<128x128xf32, #tpu.memory_space<vmem>>, %arg5: memref<1x2xf32, #tpu.memory_space<vmem>>, %arg6: memref<8x2xf32, #tpu.memory_space<vmem>>) attributes {dimension_semantics = [#tpu.dimension_semantics<parallel>], iteration_bounds = array<i64: 1>, scalar_prefetch = 0 : i64, scratch_operands = 0 : i64, tpu.core_type = #tpu.core_type<tc>, window_params = [{transform_indices = @transform_0, window_bounds = array<i64: 8, 64>}, {pipeline_mode = #tpu.pipeline_mode<synchronous>, transform_indices = @transform_1, window_bounds = array<i64: 64, 128>}, {pipeline_mode = #tpu.pipeline_mode<synchronous>, transform_indices = @transform_2, window_bounds = array<i64: 1, 128>}, {pipeline_mode = #tpu.pipeline_mode<synchronous>, transform_indices = @transform_3, window_bounds = array<i64: 128, 128>}, {pipeline_mode = #tpu.pipeline_mode<synchronous>, transform_indices = @transform_4, window_bounds = array<i64: 1, 2>}, {transform_indices = @transform_5, window_bounds = array<i64: 8, 2>}]} {
    %c0 = arith.constant 0 : index
    %c0_0 = arith.constant 0 : index
    %0 = vector.load %arg1[%c0, %c0_0] : memref<8x64xf32, #tpu.memory_space<vmem>>, vector<8x64xf32>
    %1 = arith.truncf %0 : vector<8x64xf32> to vector<8x64xbf16>
    %c0_1 = arith.constant 0 : index
    %c0_2 = arith.constant 0 : index
    %2 = vector.load %arg2[%c0_1, %c0_2] : memref<64x128xbf16, #tpu.memory_space<vmem>>, vector<64x128xbf16>
    %cst = arith.constant dense<0.000000e+00> : vector<8x128xf32>
    %3 = tpu.matmul %1, %2, %cst {dimension_numbers = #tpu.dot_dimension_numbers<[1], [0], [0], [1], [0, 0, 1, 1], [], []>} : vector<8x64xbf16>, vector<64x128xbf16>, vector<8x128xf32> -> vector<8x128xf32>
    %c0_3 = arith.constant 0 : index
    %c0_4 = arith.constant 0 : index
    %4 = vector.load %arg3[%c0_3, %c0_4] : memref<1x128xf32, #tpu.memory_space<vmem>>, vector<1x128xf32>
    %5 = vector.broadcast %4 : vector<1x128xf32> to vector<8x128xf32>
    %6 = arith.addf %3, %5 : vector<8x128xf32>
    %cst_5 = arith.constant 0.000000e+00 : f32
    %7 = vector.broadcast %cst_5 : f32 to vector<8x128xf32>
    %8 = arith.maximumf %6, %7 : vector<8x128xf32>
    %c0_6 = arith.constant 0 : index
    %c0_7 = arith.constant 0 : index
    %9 = vector.load %arg4[%c0_6, %c0_7] : memref<128x128xf32, #tpu.memory_space<vmem>>, vector<128x128xf32>
    %cst_8 = arith.constant dense<0.000000e+00> : vector<8x128xf32>
    %10 = tpu.matmul %8, %9, %cst_8 {dimension_numbers = #tpu.dot_dimension_numbers<[1], [0], [0], [1], [0, 0, 1, 1], [], []>} : vector<8x128xf32>, vector<128x128xf32>, vector<8x128xf32> -> vector<8x128xf32>
    %11 = vector.extract_strided_slice %10 {offsets = [0, 0], sizes = [8, 2], strides = [1, 1]} : vector<8x128xf32> to vector<8x2xf32>
    %c0_9 = arith.constant 0 : index
    %c0_10 = arith.constant 0 : index
    %12 = vector.load %arg5[%c0_9, %c0_10] : memref<1x2xf32, #tpu.memory_space<vmem>>, vector<1x2xf32>
    %13 = vector.broadcast %12 : vector<1x2xf32> to vector<8x2xf32>
    %14 = arith.addf %11, %13 : vector<8x2xf32>
    %c0_11 = arith.constant 0 : index
    %c0_12 = arith.constant 0 : index
    %15 = vector.load %arg6[%c0_11, %c0_12] : memref<8x2xf32, #tpu.memory_space<vmem>>, vector<8x2xf32>
    tpu.vector_store %arg6[%c0_11, %c0_12], %14 {strides = array<i32>} : memref<8x2xf32, #tpu.memory_space<vmem>>, vector<8x2xf32>,
    return
  }
  func.func @transform_0(%arg0: i32) -> (i32, i32) {
    %c0_i32 = arith.constant 0 : i32
    %c0_i32_0 = arith.constant 0 : i32
    return %arg0, %c0_i32 : i32, i32
  }
  func.func @transform_1(%arg0: i32) -> (i32, i32) {
    %c0_i32 = arith.constant 0 : i32
    %c0_i32_0 = arith.constant 0 : i32
    %c0_i32_1 = arith.constant 0 : i32
    return %c0_i32, %c0_i32_0 : i32, i32
  }
  func.func @transform_2(%arg0: i32) -> (i32, i32) {
    %c0_i32 = arith.constant 0 : i32
    %c0_i32_0 = arith.constant 0 : i32
    %c0_i32_1 = arith.constant 0 : i32
    return %c0_i32, %c0_i32_0 : i32, i32
  }
  func.func @transform_3(%arg0: i32) -> (i32, i32) {
    %c0_i32 = arith.constant 0 : i32
    %c0_i32_0 = arith.constant 0 : i32
    %c0_i32_1 = arith.constant 0 : i32
    return %c0_i32, %c0_i32_0 : i32, i32
  }
  func.func @transform_4(%arg0: i32) -> (i32, i32) {
    %c0_i32 = arith.constant 0 : i32
    %c0_i32_0 = arith.constant 0 : i32
    %c0_i32_1 = arith.constant 0 : i32
    return %c0_i32, %c0_i32_0 : i32, i32
  }
  func.func @transform_5(%arg0: i32) -> (i32, i32) {
    %c0_i32 = arith.constant 0 : i32
    %c0_i32_0 = arith.constant 0 : i32
    return %arg0, %c0_i32 : i32, i32
  }
}

</mosaic_0001>

<llo_original>
// kernel: sentiment_ann_forward.1
$region0: #{sentiment_ann_forward.1}
  #allocation0 [shape = 'u32[]', space=smem, size = 0x4, offset = 0x4, fixed_abs, tag = 'smem constant byte address 0x4 - core index']
  #allocation1 [shape = 'u32[144,128]{1,0:T(1,128)}', space=vmem, size = 0x12000, scoped, tag = 'internal scratch']
  %s0 = inlined_call_operand.hbm [shape: f32[8,64], index: 0, kind: input, shape index: {}]
  %s1 = inlined_call_operand.hbm [shape: bf16[64,128], index: 1, kind: input, shape index: {}]
  %s2 = inlined_call_operand.vmem [shape: f32[1,128], index: 2, kind: input, shape index: {}]
  %s3 = inlined_call_operand.hbm [shape: f32[128,128], index: 3, kind: input, shape index: {}]
  %s4 = inlined_call_operand.vmem [shape: f32[1,2], index: 4, kind: input, shape index: {}]
  %s5 = inlined_call_operand.vmem [shape: f32[8,2], index: 5, kind: output, shape index: {}]
  %s6 = sld [smem:[#allocation0]]
  $region42: #{sentiment_ann_forward.1} parent=0
    _
  %s8 = ssub.s32 1, %s6
  %s9 = scalar_select 0, %s8, %s6
  $region1: #{sentiment_ann_forward.1} parent=0
    #allocation2 [shape = 'u8[4096]{0}', space=vmem, size = 0x1000, scoped, tag = 'input window, operand 0, single buffered']
    #allocation3 [shape = 's32[1]{0}', space=sflag, size = 0x4, scoped, tag = 'scoped memory for sentiment_ann_forward.1']
    #allocation4 [shape = 'u8[16384]{0}', space=vmem, size = 0x4000, scoped, tag = 'input window, operand 1, single buffered']
    #allocation5 [shape = 's32[1]{0}', space=sflag, size = 0x4, scoped, tag = 'scoped memory for sentiment_ann_forward.1']
    #allocation6 [shape = 'u8[65536]{0}', space=vmem, size = 0x10000, scoped, tag = 'input window, operand 3, single buffered']
    %10 = vsyncpa [#allocation3], 0
    %11 = vsyncpa [#allocation5], 0
    // Predicated region
    $region2: #{sentiment_ann_forward.1} parent=1 // pred_check
      _
    $region3: #{sentiment_ann_forward.1} parent=1 // pred_check_branch
      %13 = sbr.rel (0) target = $region5
    $region4: #{sentiment_ann_forward.1} parent=1 // pred_region
      %s15 = ssub.s32 128, 128
      %16 = vsyncadd [#allocation3], %s15
      %s18 = sshll.u32 [#allocation2], 4
      %s19 = int_to_ptr.vmem [resolvable:$true] %s18
      %21 = dma.hbm_to_vmem [thread:$0]  %s0, 128, %s19, [#allocation3]
    $region5: #{sentiment_ann_forward.1} parent=1 // pred_fallthru
      _
    // Predicated region
    $region6: #{sentiment_ann_forward.1} parent=1 // pred_check
      _
    $region7: #{sentiment_ann_forward.1} parent=1 // pred_check_branch
      %23 = sbr.rel (0) target = $region9
    $region8: #{sentiment_ann_forward.1} parent=1 // pred_region
      %s25 = ssub.s32 512, 512
      %26 = vsyncadd [#allocation5], %s25
      %s27 = sshll.u32 [#allocation4], 4
      %s28 = int_to_ptr.vmem [resolvable:$true] %s27
      %33 = dma.hbm_to_vmem [thread:$0]  %s1, 512, %s28, [#allocation5], 64, 64, 4
    $region9: #{sentiment_ann_forward.1} parent=1 // pred_fallthru
      _
    // Predicated region
    $region10: #{sentiment_ann_forward.1} parent=1 // pred_check
      _
    $region11: #{sentiment_ann_forward.1} parent=1 // pred_check_branch
      %35 = sbr.rel (0) target = $region13
    $region12: #{sentiment_ann_forward.1} parent=1 // pred_region
      _
    $region13: #{sentiment_ann_forward.1} parent=1 // pred_fallthru
      _
    // Predicated region
    $region14: #{sentiment_ann_forward.1} parent=1 // pred_check
      _
    $region15: #{sentiment_ann_forward.1} parent=1 // pred_check_branch
      %37 = sbr.rel (0) target = $region17
    $region16: #{sentiment_ann_forward.1} parent=1 // pred_region
      %s39 = ssub.s32 2048, 2048
      %40 = vsyncadd [#allocation5], %s39
      %s41 = sshll.u32 [#allocation6], 4
      %s42 = int_to_ptr.vmem [resolvable:$true] %s41
      %47 = dma.hbm_to_vmem [thread:$0]  %s3, 2048, %s42, [#allocation5], 128, 128, 8
    $region17: #{sentiment_ann_forward.1} parent=1 // pred_fallthru
      _
    // Predicated region
    $region18: #{sentiment_ann_forward.1} parent=1 // pred_check
      _
    $region19: #{sentiment_ann_forward.1} parent=1 // pred_check_branch
      %49 = sbr.rel (0) target = $region21
    $region20: #{sentiment_ann_forward.1} parent=1 // pred_region
      _
    $region21: #{sentiment_ann_forward.1} parent=1 // pred_fallthru
      _
    // Predicated region
    $region22: #{sentiment_ann_forward.1} parent=1 // pred_check
      _
    $region23: #{sentiment_ann_forward.1} parent=1 // pred_check_branch
      %51 = sbr.rel (0) target = $region25
    $region24: #{sentiment_ann_forward.1} parent=1 // pred_region
      %52 = dma.done [#allocation3], 128
    $region25: #{sentiment_ann_forward.1} parent=1 // pred_fallthru
      _
    // Predicated region
    $region26: #{sentiment_ann_forward.1} parent=1 // pred_check
      _
    $region27: #{sentiment_ann_forward.1} parent=1 // pred_check_branch
      %54 = sbr.rel (0) target = $region29
    $region28: #{sentiment_ann_forward.1} parent=1 // pred_region
      %55 = dma.done [#allocation5], 512
    $region29: #{sentiment_ann_forward.1} parent=1 // pred_fallthru
      _
    // Predicated region
    $region30: #{sentiment_ann_forward.1} parent=1 // pred_check
      _
    $region31: #{sentiment_ann_forward.1} parent=1 // pred_check_branch
      %57 = sbr.rel (0) target = $region33
    $region32: #{sentiment_ann_forward.1} parent=1 // pred_region
      %58 = dma.done [#allocation5], 2048
    $region33: #{sentiment_ann_forward.1} parent=1 // pred_fallthru
      _
    %v60 = vld [vmem:[#allocation2] sm:$0xff]
    %v61 = vpack.c.bf16 %v60, %v60
    %v62 = vld [vmem:[#allocation4] sm:$0xf]
    %v63 = vld [vmem:[#allocation4 + $0x4] sm:$0xf]
    %v64 = vld [vmem:[#allocation4 + $0x8] sm:$0xf]
    %v65 = vld [vmem:[#allocation4 + $0xc] sm:$0xf]
    %v66 = vld [vmem:[#allocation4 + $0x10] sm:$0xf]
    %v67 = vld [vmem:[#allocation4 + $0x14] sm:$0xf]
    %v68 = vld [vmem:[#allocation4 + $0x18] sm:$0xf]
    %v69 = vld [vmem:[#allocation4 + $0x1c] sm:$0xf]
    %v70 = vld [vmem:[%s2] sm:$0x1]
    %v72 = vlaneseq
    %v73 = vshrl.u32 %v72, 7
    %v74 = vsub.s32 0, %v73
    %v75 = vrot.slane %v70, %v74
    %v85 = vunpack.c.l.b16 %v62
    %v86 = vunpack.c.l.b16 %v63
    %v87 = vunpack.c.l.b16 %v64
    %v88 = vunpack.c.l.b16 %v65
    %v89 = vunpack.c.l.b16 %v66
    %v90 = vunpack.c.l.b16 %v67
    %v91 = vunpack.c.l.b16 %v68
    %v92 = vunpack.c.l.b16 %v69
    %v93 = vpack.c.b16 %v86, %v85
    %v94 = vpack.c.b16 %v88, %v87
    %v95 = vpack.c.b16 %v90, %v89
    %v96 = vpack.c.b16 %v92, %v91
    %vm101 = vcmask 523264
    %v103 = vsel %vm101, %v61, 0
    %105 = vmatprep.subr.bf16.mxu0 0
    %106 = vmatpush1.bf16.msra.mxu0 0
    %107 = vmatprep.subr.bf16.mxu0 0
    %108 = vmatpush1.bf16.msra.mxu0 0
    %109 = vmatprep.subr.bf16.mxu0 0
    %110 = vmatpush1.bf16.msra.mxu0 0
    %111 = vmatprep.subr.bf16.mxu0 0
    %112 = vmatpush1.bf16.msra.mxu0 0
    %113 = vmatprep.subr.bf16.mxu0 0
    %114 = vmatpush1.bf16.msra.mxu0 %v96
    %115 = vmatprep.subr.bf16.mxu0 0
    %116 = vmatpush1.bf16.msra.mxu0 %v95
    %117 = vmatprep.subr.bf16.mxu0 0
    %118 = vmatpush1.bf16.msra.mxu0 %v94
    %119 = vmatprep.subr.bf16.mxu0 0
    %120 = vmatpush1.bf16.msra.mxu0 %v93
    %121 = vmatprep.subr.bf16.mxu0 0
    %122 = vmatpush2.bf16.msra.mxu0 0
    %123 = vmatprep.subr.bf16.mxu0 0
    %124 = vmatpush2.bf16.msra.mxu0 0
    %125 = vmatprep.subr.bf16.mxu0 0
    %126 = vmatpush2.bf16.msra.mxu0 0
    %127 = vmatprep.subr.bf16.mxu0 0
    %128 = vmatpush2.bf16.msra.mxu0 0
    %129 = vmatprep.subr.bf16.mxu0 0
    %130 = vmatpush2.bf16.msra.mxu0 0
    %131 = vmatprep.subr.bf16.mxu0 0
    %132 = vmatpush2.bf16.msra.mxu0 0
    %133 = vmatprep.subr.bf16.mxu0 0
    %134 = vmatpush2.bf16.msra.mxu0 0
    %135 = vmatprep.subr.bf16.mxu0 0
    %136 = vmatpush2.bf16.msra.mxu0 0
    %137 = vmatprep.mubr.bf16.mxu0 0
    %138 = vmatmul.mubr.bf16.gmra.mxu0 %v103
    %v139 = vpop.f32.mrf.mxu0
    %v140 = vadd.f32 %v75, %v139
    %v141 = vpop.f32.mrf.mxu0
    %v142 = vpop.f32.mrf.mxu0
    %v143 = vpop.f32.mrf.mxu0
    %144 = vdwg.mxu0
    %v145 = vmax.f32 %v140, 0.0
    %v146 = vld [vmem:[#allocation6] sm:$0xff]
    %v147 = vld [vmem:[#allocation6 + $0x8] sm:$0xff]
    %v148 = vld [vmem:[#allocation6 + $0x10] sm:$0xff]
    %v149 = vld [vmem:[#allocation6 + $0x18] sm:$0xff]
    %v150 = vld [vmem:[#allocation6 + $0x20] sm:$0xff]
    %v151 = vld [vmem:[#allocation6 + $0x28] sm:$0xff]
    %v152 = vld [vmem:[#allocation6 + $0x30] sm:$0xff]
    %v153 = vld [vmem:[#allocation6 + $0x38] sm:$0xff]
    %v154 = vld [vmem:[#allocation6 + $0x40] sm:$0xff]
    %v155 = vld [vmem:[#allocation6 + $0x48] sm:$0xff]
    %v156 = vld [vmem:[#allocation6 + $0x50] sm:$0xff]
    %v157 = vld [vmem:[#allocation6 + $0x58] sm:$0xff]
    %v158 = vld [vmem:[#allocation6 + $0x60] sm:$0xff]
    %v159 = vld [vmem:[#allocation6 + $0x68] sm:$0xff]
    %v160 = vld [vmem:[#allocation6 + $0x70] sm:$0xff]
    %v161 = vld [vmem:[#allocation6 + $0x78] sm:$0xff]
    %162 = vmatprep.subr.mxu0 0.0
    %163 = vmatpush1.msra.mxu0 %v161
    %164 = vmatprep.subr.mxu0 0.0
    %165 = vmatpush1.msra.mxu0 %v160
    %166 = vmatprep.subr.mxu0 0.0
    %167 = vmatpush1.msra.mxu0 %v159
    %168 = vmatprep.subr.mxu0 0.0
    %169 = vmatpush1.msra.mxu0 %v158
    %170 = vmatprep.subr.mxu0 0.0
    %171 = vmatpush1.msra.mxu0 %v157
    %172 = vmatprep.subr.mxu0 0.0
    %173 = vmatpush1.msra.mxu0 %v156
    %174 = vmatprep.subr.mxu0 0.0
    %175 = vmatpush1.msra.mxu0 %v155
    %176 = vmatprep.subr.mxu0 0.0
    %177 = vmatpush1.msra.mxu0 %v154
    %178 = vmatprep.subr.mxu0 0.0
    %179 = vmatpush1.msra.mxu0 %v153
    %180 = vmatprep.subr.mxu0 0.0
    %181 = vmatpush1.msra.mxu0 %v152
    %182 = vmatprep.subr.mxu0 0.0
    %183 = vmatpush1.msra.mxu0 %v151
    %184 = vmatprep.subr.mxu0 0.0
    %185 = vmatpush1.msra.mxu0 %v150
    %186 = vmatprep.subr.mxu0 0.0
    %187 = vmatpush1.msra.mxu0 %v149
    %188 = vmatprep.subr.mxu0 0.0
    %189 = vmatpush1.msra.mxu0 %v148
    %190 = vmatprep.subr.mxu0 0.0
    %191 = vmatpush1.msra.mxu0 %v147
    %192 = vmatprep.subr.mxu0 0.0
    %193 = vmatpush1.msra.mxu0 %v146
    %194 = vmatprep.subr.mxu0 0.0
    %195 = vmatpush2.msra.mxu0 0.0
    %196 = vmatprep.subr.mxu0 0.0
    %197 = vmatpush2.msra.mxu0 0.0
    %198 = vmatprep.subr.mxu0 0.0
    %199 = vmatpush2.msra.mxu0 0.0
    %200 = vmatprep.subr.mxu0 0.0
    %201 = vmatpush2.msra.mxu0 0.0
    %202 = vmatprep.subr.mxu0 0.0
    %203 = vmatpush2.msra.mxu0 0.0
    %204 = vmatprep.subr.mxu0 0.0
    %205 = vmatpush2.msra.mxu0 0.0
    %206 = vmatprep.subr.mxu0 0.0
    %207 = vmatpush2.msra.mxu0 0.0
    %208 = vmatprep.subr.mxu0 0.0
    %209 = vmatpush2.msra.mxu0 0.0
    %210 = vmatprep.subr.mxu0 0.0
    %211 = vmatpush2.msra.mxu0 0.0
    %212 = vmatprep.subr.mxu0 0.0
    %213 = vmatpush2.msra.mxu0 0.0
    %214 = vmatprep.subr.mxu0 0.0
    %215 = vmatpush2.msra.mxu0 0.0
    %216 = vmatprep.subr.mxu0 0.0
    %217 = vmatpush2.msra.mxu0 0.0
    %218 = vmatprep.subr.mxu0 0.0
    %219 = vmatpush2.msra.mxu0 0.0
    %220 = vmatprep.subr.mxu0 0.0
    %221 = vmatpush2.msra.mxu0 0.0
    %222 = vmatprep.subr.mxu0 0.0
    %223 = vmatpush2.msra.mxu0 0.0
    %224 = vmatprep.subr.mxu0 0.0
    %225 = vmatpush2.msra.mxu0 0.0
    %226 = vmatprep.mubr.f32.mxu0 0.0
    %227 = vmatmul.mubr.f32.gmra.mxu0 %v145
    %v228 = vpop.f32.mrf.mxu0
    %v229 = vadd.f32 0.0, %v228
    %v230 = vpop.f32.mrf.mxu0
    %231 = vdwg.mxu0
    %v232 = vld [vmem:[%s4] sm:$0x1]
    %v234 = vlaneseq
    %v235 = vshrl.u32 %v234, 7
    %v236 = vsub.s32 0, %v235
    %v237 = vrot.slane %v232, %v236
    %v239 = vadd.f32 %v229, %v237
    %vm240 = vcmask 15360
    %241 = vst.msk [vmem:[%s5] sm:$0xff] %vm240, %v239
    // Predicated region
    $region34: #{sentiment_ann_forward.1} parent=1 // pred_check
      _
    $region35: #{sentiment_ann_forward.1} parent=1 // pred_check_branch
      %243 = sbr.rel (0) target = $region37
    $region36: #{sentiment_ann_forward.1} parent=1 // pred_region
      _
    $region37: #{sentiment_ann_forward.1} parent=1 // pred_fallthru
      _
    // Predicated region
    $region38: #{sentiment_ann_forward.1} parent=1 // pred_check
      _
    $region39: #{sentiment_ann_forward.1} parent=1 // pred_check_branch
      %245 = sbr.rel (0) target = $region41
    $region40: #{sentiment_ann_forward.1} parent=1 // pred_region
      _
    $region41: #{sentiment_ann_forward.1} parent=1 // pred_fallthru
      _
    %246 = vsyncpa [#allocation3], 1
    %247 = vsyncpa [#allocation5], 1

</llo_original>
